<compile_context>
chip_gen: v5e
topology: v5e:2x2
jax: 0.10.0
libtpu: 0.0.40
codegen_flags: <defaults>
</compile_context>

<pallas_src>
import functools

import jax
import jax.numpy as jnp
from jax.experimental import pallas as pl
from jax.experimental.pallas import tpu as pltpu

_MAX_TILE_LANES = 32768      # 8 MiB f32 output block at K=64 (review: v6e/v7x)
_VMEM_LIMIT_BYTES = 32 << 20  # above v5e's 16 MiB scoped default, < physical on all chips


# ----------------------------- Pallas kernel ------------------------------ #
def _deblock_kernel(x_ref, w_ref, shift_ref, o_ref):
    # x_ref:     (C_in, TM)  pixels of one image, lanes = flattened (h, w)
    # w_ref:     (K, C_in)   BN-scale-folded deconv weights, rows = (kh, kw, c)
    # shift_ref: (K, 1)      folded BN shift  (beta - mean * scale)
    # o_ref:     (K, TM)     lane-dense output block
    acc = jnp.dot(w_ref[...], x_ref[...], preferred_element_type=jnp.float32)
    o_ref[...] = jnp.maximum(acc + shift_ref[...], 0.0).astype(o_ref.dtype)


def _vmem_budget_bytes():
    """VMEM budget for the double-buffered in/out blocks (with headroom)."""
    cap = 64 << 20
    try:
        cap = int(getattr(pltpu.get_tpu_info(), "vmem_capacity_bytes", cap))
    except Exception:
        pass  # conservative fallback if the query is unavailable
    return min(24 << 20, cap // 3)


def _choose_pixel_tiling(hw, n_images, c_in, k):
    """Pick (TM, nb): lanes per grid step over the per-image h*w axis."""
    bytes_per_lane = 2 * (c_in + k) * 4          # double-buffered in+out, f32
    max_tm = (_vmem_budget_bytes() // bytes_per_lane) // 128 * 128
    max_tm = max(128, min(_MAX_TILE_LANES, max_tm))
    nb = pl.cdiv(hw, max_tm)
    # Keep the total number of parallel grid steps even so v7x's two
    # TensorCores get equal work (costs at most one extra 128-lane sliver).
    if (n_images * nb) % 2 == 1 and hw > 128:
        nb += 1
    tm = pl.cdiv(pl.cdiv(hw, nb), 128) * 128
    return tm, nb


def fused_deblocks_matmul(x3, w_rows, shift_rows, tm, out_dtype=jnp.float32):
    # x3: (N, C_in, HW_pad), w_rows: (K, C_in), shift_rows: (K, 1)
    n, c_in, hw_pad = x3.shape
    k = w_rows.shape[0]
    assert hw_pad % tm == 0
    nb = hw_pad // tm

    out_bytes = jnp.dtype(out_dtype).itemsize
    cost = pl.CostEstimate(
        flops=2 * k * c_in * n * hw_pad,
        transcendentals=0,
        bytes_accessed=(4 * c_in * n * hw_pad          # input read
                        + out_bytes * k * n * hw_pad   # output write
                        + 4 * (k * c_in + k)),         # weights + shift
    )

    return pl.pallas_call(
        _deblock_kernel,
        out_shape=jax.ShapeDtypeStruct((n, k, hw_pad), out_dtype),
        grid_spec=pltpu.PrefetchScalarGridSpec(
            num_scalar_prefetch=0,
            grid=(n, nb),
            in_specs=[
                pl.BlockSpec((None, c_in, tm), lambda i, j: (i, 0, j)),
                pl.BlockSpec((k, c_in), lambda i, j: (0, 0)),
                pl.BlockSpec((k, 1), lambda i, j: (0, 0)),
            ],
            out_specs=pl.BlockSpec((None, k, tm), lambda i, j: (i, 0, j)),
        ),
        compiler_params=pltpu.CompilerParams(
            dimension_semantics=("parallel", "parallel"),
            vmem_limit_bytes=_VMEM_LIMIT_BYTES),
        cost_estimate=cost,
    )(x3, w_rows, shift_rows)


# ---------------------------- Module wrapper ------------------------------ #
class BaseBEVBackboneDeepSupervisionPallas:
    def __init__(self, model_cfg, input_channels, key):
        self.model_cfg = model_cfg
        self.deep_supervision = model_cfg["deep_supervision"]
        assert self.deep_supervision

        self.num_levels = len(model_cfg["layer_nums"])
        self.cin_ds = model_cfg["num_filters_deep_supervision"]
        self.cout_ds = model_cfg["num_upsample_filter_deep_supervision"]
        self.strides_ds = model_cfg["upsample_strides_deep_supervision"]
        self.eps = 1e-3
        self.c_in = input_channels
        self.training = False  # BN is folded in eval/inference mode only

        s0 = self.strides_ds[0]
        assert all(s == s0 for s in self.strides_ds), \
            "torch.cat requires equal spatial sizes across branches"
        assert s0 >= 1, "fractional deep-supervision strides not exercised"
        self.stride = int(s0)
        self.c_all = int(sum(self.cout_ds))

        # Deterministic synthetic parameters (no checkpoint).
        self.params = []
        for i in range(self.num_levels):
            key, k_w, k_g, k_b, k_m, k_v = jax.random.split(key, 6)
            c_in, c_out, s = self.cin_ds[i], self.cout_ds[i], self.strides_ds[i]
            assert c_in == input_channels, "forward feeds raw x to every branch"
            w = 0.1 * jax.random.normal(k_w, (c_in, c_out, s, s), jnp.float32)
            gamma = 1.0 + 0.2 * jax.random.normal(k_g, (c_out,), jnp.float32)
            beta = 0.1 * jax.random.normal(k_b, (c_out,), jnp.float32)
            rmean = 0.05 * jax.random.normal(k_m, (c_out,), jnp.float32)
            rvar = 1.0 + 0.2 * jax.random.uniform(k_v, (c_out,), jnp.float32)
            self.params.append(dict(w=w, gamma=gamma, beta=beta,
                                    rmean=rmean, rvar=rvar))

        # Pack BN-scale-folded weights into one (K, C_in) slab with rows
        # ordered (kh, kw, c_all); the matching shift is tiled per (kh, kw).
        w_blocks, shift_blocks = [], []
        for p in self.params:
            sc = p["gamma"] / jnp.sqrt(p["rvar"] + self.eps)
            sh = p["beta"] - p["rmean"] * sc
            wf = p["w"] * sc[None, :, None, None]              # (C_in,co,s,s)
            w_blocks.append(jnp.transpose(wf, (2, 3, 1, 0)))   # (s,s,co,C_in)
            shift_blocks.append(sh)
        s = self.stride
        w_rows = jnp.concatenate(w_blocks, axis=2)             # (s,s,C_all,C_in)
        self.w_rows = w_rows.reshape(s * s * self.c_all, input_channels)
        sh_all = jnp.concatenate(shift_blocks)                 # (C_all,)
        self.shift_rows = jnp.tile(sh_all, s * s)[:, None]     # (K, 1)

        # Faithful to the PyTorch module (it uses num_upsample_filter), even
        # though the forward's actual output channel count is c_all; exposed
        # separately so downstream code can use the correct value.
        self.num_bev_features = sum(model_cfg["num_upsample_filter"])
        self.num_out_channels = self.c_all

    def __call__(self, x, out_dtype=jnp.float32):
        # x: (N, C_in, H, W) float32, NCHW (PyTorch convention).
        assert not self.training, "BatchNorm is folded in eval mode only"
        N, C, H, W = x.shape
        assert C == self.c_in
        s = self.stride
        hw = H * W

        tm, nb = _choose_pixel_tiling(hw, N, C, self.w_rows.shape[0])
        hw_pad = tm * nb

        # Free view of NCHW -> (N, C_in, H*W): no input transpose / HBM round
        # trip (only a small pad copy when H*W isn't a tile multiple).
        x3 = x.reshape(N, C, hw)
        if hw_pad != hw:
            x3 = jnp.pad(x3, ((0, 0), (0, 0), (0, hw_pad - hw)))

        y = fused_deblocks_matmul(x3, self.w_rows, self.shift_rows, tm,
                                  out_dtype=out_dtype)
        y = y[:, :, :hw]

        # rows = (kh, kw, c), pixels = (h, w):
        # (N, s, s, C_all, H, W) -> (N, C_all, H, kh, W, kw) -> NCHW.
        # NOTE: this 6-D transpose materializes one extra copy of the output
        # tensor in XLA -- it is the remaining HBM cost of this op (see
        # TODO(synk) at the top about fusing the scatter into the kernel).
        # The final reshape merging adjacent dims is a free view.
        y = y.reshape(N, s, s, self.c_all, H, W)
        y = jnp.transpose(y, (0, 3, 4, 1, 5, 2))
        return y.reshape(N, self.c_all, H * s, W * s)


# -------------------------- pure-JAX reference ----------------------------- #
def reference_forward(x, module):
    ups = []
    for p in module.params:
        # ConvTranspose2d(k=s, stride=s, bias=False)
        y = jnp.einsum("nchw,coij->nohiwj", x, p["w"])
        N, co, H, s_, W, _ = y.shape
        y = y.reshape(N, co, H * s_, W * s_)
        sc = p["gamma"] / jnp.sqrt(p["rvar"] + module.eps)
        sh = p["beta"] - p["rmean"] * sc
        y = y * sc[None, :, None, None] + sh[None, :, None, None]
        ups.append(jnp.maximum(y, 0.0))
    return jnp.concatenate(ups, axis=1) if len(ups) > 1 else ups[0]


if __name__ == "__main__":
    model_cfg = {
        "deep_supervision": True,
        "layer_nums": [3, 5],
        "layer_strides": [2, 2],
        "num_filters": [64, 128],
        "upsample_strides": [1, 2],
        "num_upsample_filter": [8, 8],
        "num_filters_deep_supervision": [4, 4],
        "num_upsample_filter_deep_supervision": [8, 8],
        "upsample_strides_deep_supervision": [2, 2],
    }
    input_channels = 4

    key = jax.random.PRNGKey(0)
    key, k_x = jax.random.split(key)
    x = jax.random.normal(k_x, (2, 4, 16, 16), jnp.float32)  # NCHW

    module = BaseBEVBackboneDeepSupervisionPallas(model_cfg, input_channels, key)
    ref = jax.block_until_ready(reference_forward(x, module))

    # f32 writeback (matches the PyTorch module bit-for-bit semantics).
    fwd = jax.jit(module.__call__)
    out = jax.block_until_ready(fwd(x))
    assert out.shape == (2, 16, 32, 32), out.shape
    assert jnp.allclose(out, ref, rtol=1e-5, atol=1e-5), \
        float(jnp.max(jnp.abs(out - ref)))

    # bf16 writeback path (halves the dominant output HBM stream of both the
    # kernel and the XLA scatter); accumulation stays f32, so only the final
    # store rounds -> loose tolerance.
    fwd_bf16 = jax.jit(functools.partial(module.__call__,
                                         out_dtype=jnp.bfloat16))
    out_bf16 = jax.block_until_ready(fwd_bf16(x)).astype(jnp.float32)
    assert out_bf16.shape == (2, 16, 32, 32), out_bf16.shape
    assert jnp.allclose(out_bf16, ref, rtol=3e-2, atol=3e-2), \
        float(jnp.max(jnp.abs(out_bf16 - ref)))

    print("KERNEL_OK")
</pallas_src>

<mosaic_0001>
module attributes {stable_mosaic.version = 11 : i64} {
  func.func @_deblock_kernel(%arg0: i32, %arg1: i32, %arg2: memref<1x4x256xf32, #tpu.memory_space<vmem>>, %arg3: memref<64x4xf32, #tpu.memory_space<vmem>>, %arg4: memref<64x1xf32, #tpu.memory_space<vmem>>, %arg5: memref<1x64x256xf32, #tpu.memory_space<vmem>>) attributes {dimension_semantics = [#tpu.dimension_semantics<parallel>, #tpu.dimension_semantics<parallel>], iteration_bounds = array<i64: 2, 1>, scalar_prefetch = 0 : i64, scratch_operands = 0 : i64, tpu.core_type = #tpu.core_type<tc>, window_params = [{transform_indices = @transform_0, window_bounds = array<i64: 1, 4, 256>}, {pipeline_mode = #tpu.pipeline_mode<synchronous>, transform_indices = @transform_1, window_bounds = array<i64: 64, 4>}, {pipeline_mode = #tpu.pipeline_mode<synchronous>, transform_indices = @transform_2, window_bounds = array<i64: 64, 1>}, {transform_indices = @transform_3, window_bounds = array<i64: 1, 64, 256>}]} {
    %c0 = arith.constant 0 : index
    %c0_0 = arith.constant 0 : index
    %0 = vector.load %arg3[%c0, %c0_0] : memref<64x4xf32, #tpu.memory_space<vmem>>, vector<64x4xf32>
    %c0_1 = arith.constant 0 : index
    %c0_2 = arith.constant 0 : index
    %c0_3 = arith.constant 0 : index
    %1 = vector.load %arg2[%c0_1, %c0_2, %c0_3] : memref<1x4x256xf32, #tpu.memory_space<vmem>>, vector<1x4x256xf32>
    %2 = vector.shape_cast %1 : vector<1x4x256xf32> to vector<4x256xf32>
    %cst = arith.constant dense<0.000000e+00> : vector<64x256xf32>
    %3 = tpu.matmul %0, %2, %cst {dimension_numbers = #tpu.dot_dimension_numbers<[1], [0], [0], [1], [0, 0, 1, 1], [], []>} : vector<64x4xf32>, vector<4x256xf32>, vector<64x256xf32> -> vector<64x256xf32>
    %c0_4 = arith.constant 0 : index
    %c0_5 = arith.constant 0 : index
    %4 = vector.load %arg4[%c0_4, %c0_5] : memref<64x1xf32, #tpu.memory_space<vmem>>, vector<64x1xf32>
    %5 = vector.broadcast %4 : vector<64x1xf32> to vector<64x256xf32>
    %6 = arith.addf %3, %5 : vector<64x256xf32>
    %cst_6 = arith.constant 0.000000e+00 : f32
    %7 = vector.broadcast %cst_6 : f32 to vector<64x256xf32>
    %8 = arith.maximumf %6, %7 : vector<64x256xf32>
    %c0_7 = arith.constant 0 : index
    %c0_8 = arith.constant 0 : index
    %c0_9 = arith.constant 0 : index
    %9 = vector.load %arg5[%c0_7, %c0_8, %c0_9] : memref<1x64x256xf32, #tpu.memory_space<vmem>>, vector<1x64x256xf32>
    %10 = vector.shape_cast %9 : vector<1x64x256xf32> to vector<64x256xf32>
    %11 = vector.shape_cast %8 : vector<64x256xf32> to vector<1x64x256xf32>
    tpu.vector_store %arg5[%c0_7, %c0_8, %c0_9], %11 {strides = array<i32>} : memref<1x64x256xf32, #tpu.memory_space<vmem>>, vector<1x64x256xf32>,
    return
  }
  func.func @transform_0(%arg0: i32, %arg1: i32) -> (i32, i32, i32) {
    %c0_i32 = arith.constant 0 : i32
    %c0_i32_0 = arith.constant 0 : i32
    return %arg0, %c0_i32, %arg1 : i32, i32, i32
  }
  func.func @transform_1(%arg0: i32, %arg1: i32) -> (i32, i32) {
    %c0_i32 = arith.constant 0 : i32
    %c0_i32_0 = arith.constant 0 : i32
    %c0_i32_1 = arith.constant 0 : i32
    return %c0_i32, %c0_i32_0 : i32, i32
  }
  func.func @transform_2(%arg0: i32, %arg1: i32) -> (i32, i32) {
    %c0_i32 = arith.constant 0 : i32
    %c0_i32_0 = arith.constant 0 : i32
    %c0_i32_1 = arith.constant 0 : i32
    return %c0_i32, %c0_i32_0 : i32, i32
  }
  func.func @transform_3(%arg0: i32, %arg1: i32) -> (i32, i32, i32) {
    %c0_i32 = arith.constant 0 : i32
    %c0_i32_0 = arith.constant 0 : i32
    return %arg0, %c0_i32, %arg1 : i32, i32, i32
  }
}

</mosaic_0001>

<llo_original>
// kernel: a_call__.1
$region0: #{a_call__.1}
  #allocation0 [shape = 'u32[]', space=smem, size = 0x4, offset = 0x4, fixed_abs, tag = 'smem constant byte address 0x4 - core index']
  #allocation1 [shape = 'u32[72,128]{1,0:T(1,128)}', space=vmem, size = 0x9000, scoped, tag = 'internal scratch']
  %s0 = inlined_call_operand.vmem [shape: f32[2,4,256], index: 0, kind: input, shape index: {}]
  %s1 = inlined_call_operand.vmem [shape: f32[64,4], index: 1, kind: input, shape index: {}]
  %s2 = inlined_call_operand.vmem [shape: f32[64,1], index: 2, kind: input, shape index: {}]
  %s3 = inlined_call_operand.vmem [shape: f32[2,64,256], index: 3, kind: output, shape index: {}]
  %s4 = sld [smem:[#allocation0]]
  $region45: #{a_call__.1} parent=0
    _
  %s6 = ssub.s32 1, %s4
  %s7 = scalar_select 0, %s6, %s4
  loop: start=0, step=1, limit=4
  $region2: #{a_call__.1} parent=0 // loop_pre_header
    _
  $region3: #{a_call__.1} parent=0 // loop_header
    %s9 = sphi 0, %s13
    %p10 = scmp.ge.s32.totalorder %s9, 4
    %s16 = sphi 0, %s28
    %s17 = sphi 0, %s24
    %s18 = sphi 0, %s16
    %s19 = sphi 0, %s17
    %s20 = sphi 0, %s18
    %s21 = sphi 0, %s19
    %s33 = sphi 0, %s35
    %s36 = sphi 0, %s33
    %s37 = sphi 0, %s36
    %s53 = sphi 0, %s37
    %s57 = sphi 0, %s57
    %s59 = sphi 0, %s57
    %s60 = sphi 0, %s59
    %s74 = sphi 0, %s60
    %s78 = sphi 0, %s78
    %s80 = sphi 0, %s78
    %s81 = sphi 0, %s80
    %s95 = sphi 0, %s81
    %s103 = sphi 0, %s105
    %s106 = sphi 0, %s103
    %s107 = sphi 0, %s106
    %s123 = sphi 0, %s107
  $region4: #{a_call__.1} parent=0 // loop_header_branch
    %12 = sbr.rel (%p10) target = $region8
  $region5: #{a_call__.1} parent=0 // loop_body
    %s14 = ssub.s32 %s9, 1
    %s15 = ssub.s32 %s9, 2
    %s22 = sadd.s32 1, %s17
    %p23 = scmp.ge.s32.totalorder %s22, 1
    %s24 = scalar_select %p23, 0, %s22
    %s25 = sadd.s32 1, %s16
    %s26 = scalar_select %p23, %s25, %s16
    %p27 = scmp.ge.s32.totalorder %s26, 2
    %s28 = scalar_select %p27, 0, %s26
    %s29 = ssub.s32 %s16, %s28
    %s30 = ssub.s32 %s17, %s24
    %s31 = sor.u32 %s29, %s30
    %p32 = scmp.eq.s32.totalorder %s31, 0
    %s34 = sadd.s32 %s33, 1
    %s35 = scalar_select %p32, %s33, %s34
    %p38 = pneg %p32
    %p39 = scmp.eq.s32.totalorder %s9, 1
    %p40 = por %p38, %p39
    %p41 = scmp.ne.s32.totalorder %s33, %s36
    %p42 = scmp.eq.s32.totalorder %s9, 0
    %p43 = por %p41, %p42
    %p44 = scmp.ne.s32.totalorder %s33, %s36
    %p45 = scmp.eq.s32.totalorder %s14, 1
    %p46 = por %p44, %p45
    %p47 = scmp.ne.s32.totalorder %s36, %s37
    %p48 = scmp.eq.s32.totalorder %s14, 0
    %p49 = por %p47, %p48
    %p50 = scmp.ne.s32.totalorder %s36, %s37
    %p51 = scmp.eq.s32.totalorder %s15, 1
    %p52 = por %p50, %p51
    %p54 = scmp.ne.s32.totalorder %s37, %s53
    %p55 = scmp.eq.s32.totalorder %s15, 0
    %p56 = por %p54, %p55
    %s58 = sadd.s32 %s57, 1
    %p61 = scmp.eq.s32.totalorder %s9, 1
    %p62 = scmp.ne.s32.totalorder %s57, %s59
    %p63 = scmp.eq.s32.totalorder %s9, 0
    %p64 = por %p62, %p63
    %p65 = scmp.ne.s32.totalorder %s57, %s59
    %p66 = scmp.eq.s32.totalorder %s14, 1
    %p67 = por %p65, %p66
    %p68 = scmp.ne.s32.totalorder %s59, %s60
    %p69 = scmp.eq.s32.totalorder %s14, 0
    %p70 = por %p68, %p69
    %p71 = scmp.ne.s32.totalorder %s59, %s60
    %p72 = scmp.eq.s32.totalorder %s15, 1
    %p73 = por %p71, %p72
    %p75 = scmp.ne.s32.totalorder %s60, %s74
    %p76 = scmp.eq.s32.totalorder %s15, 0
    %p77 = por %p75, %p76
    %s79 = sadd.s32 %s78, 1
    %p82 = scmp.eq.s32.totalorder %s9, 1
    %p83 = scmp.ne.s32.totalorder %s78, %s80
    %p84 = scmp.eq.s32.totalorder %s9, 0
    %p85 = por %p83, %p84
    %p86 = scmp.ne.s32.totalorder %s78, %s80
    %p87 = scmp.eq.s32.totalorder %s14, 1
    %p88 = por %p86, %p87
    %p89 = scmp.ne.s32.totalorder %s80, %s81
    %p90 = scmp.eq.s32.totalorder %s14, 0
    %p91 = por %p89, %p90
    %p92 = scmp.ne.s32.totalorder %s80, %s81
    %p93 = scmp.eq.s32.totalorder %s15, 1
    %p94 = por %p92, %p93
    %p96 = scmp.ne.s32.totalorder %s81, %s95
    %p97 = scmp.eq.s32.totalorder %s15, 0
    %p98 = por %p96, %p97
    %s99 = ssub.s32 %s16, %s28
    %s100 = ssub.s32 %s17, %s24
    %s101 = sor.u32 %s99, %s100
    %p102 = scmp.eq.s32.totalorder %s101, 0
    %s104 = sadd.s32 %s103, 1
    %s105 = scalar_select %p102, %s103, %s104
    %p108 = pneg %p102
    %p109 = scmp.eq.s32.totalorder %s9, 1
    %p110 = por %p108, %p109
    %p111 = scmp.ne.s32.totalorder %s103, %s106
    %p112 = scmp.eq.s32.totalorder %s9, 0
    %p113 = por %p111, %p112
    %p114 = scmp.ne.s32.totalorder %s103, %s106
    %p115 = scmp.eq.s32.totalorder %s14, 1
    %p116 = por %p114, %p115
    %p117 = scmp.ne.s32.totalorder %s106, %s107
    %p118 = scmp.eq.s32.totalorder %s14, 0
    %p119 = por %p117, %p118
    %p120 = scmp.ne.s32.totalorder %s106, %s107
    %p121 = scmp.eq.s32.totalorder %s15, 1
    %p122 = por %p120, %p121
    %p124 = scmp.ne.s32.totalorder %s107, %s123
    %p125 = scmp.eq.s32.totalorder %s15, 0
    %p126 = por %p124, %p125
    %p127 = scmp.le.s32.totalorder 1, %s9
    %p128 = scmp.lt.s32.totalorder %s9, 3
    %p129 = pnand %p127, %p128
    %p130 = pneg %p129
    // Predicated region
    $region9: #{a_call__.1} parent=5 // pred_check
      _
    $region10: #{a_call__.1} parent=5 // pred_check_branch
      %132 = sbr.rel (%p129) target = $region12
    $region11: #{a_call__.1} parent=5 // pred_region
      %s133 = ssub.s32 %s9, 1
      // Predicated region
      $region13: #{a_call__.1} parent=11 // pred_check
        %p134 = pneg %p70
      $region14: #{a_call__.1} parent=11 // pred_check_branch
        %136 = sbr.rel (%p134) target = $region16
      $region15: #{a_call__.1} parent=11 // pred_region
        _
      $region16: #{a_call__.1} parent=11 // pred_fallthru
        _
      // Predicated region
      $region17: #{a_call__.1} parent=11 // pred_check
        %p137 = pneg %p91
      $region18: #{a_call__.1} parent=11 // pred_check_branch
        %139 = sbr.rel (%p137) target = $region20
      $region19: #{a_call__.1} parent=11 // pred_region
        _
      $region20: #{a_call__.1} parent=11 // pred_fallthru
        _
    $region12: #{a_call__.1} parent=5 // pred_fallthru
      _
    %p140 = scmp.lt.s32.totalorder %s9, 2
    // Predicated region
    $region21: #{a_call__.1} parent=5 // pred_check
      %p141 = pneg %p140
    $region22: #{a_call__.1} parent=5 // pred_check_branch
      %143 = sbr.rel (%p141) target = $region24
    $region23: #{a_call__.1} parent=5 // pred_region
      // Predicated region
      $region25: #{a_call__.1} parent=23 // pred_check
        %p144 = pneg %p43
      $region26: #{a_call__.1} parent=23 // pred_check_branch
        %146 = sbr.rel (%p144) target = $region28
      $region27: #{a_call__.1} parent=23 // pred_region
        %s147 = smul.u32 2, %s17
        %p148 = scmp.lt.s32.totalorder %s16, 1
        %s149 = scalar_select %p148, %s16, 1
        %p150 = scmp.lt.s32.totalorder %s147, 1
        %s151 = scalar_select %p150, %s147, 1
        %s152 = smul.addr %s149, 2
        %s153 = sadd.s32 %s151, %s152
        %s154 = smul.addr %s153, 4
        %s155 = scalar_lea.vmem %s0, %s154
        %s156 = smul.u32 2, %s17
      $region28: #{a_call__.1} parent=23 // pred_fallthru
        _
    $region24: #{a_call__.1} parent=5 // pred_fallthru
      _
    %p157 = scmp.le.s32.totalorder 1, %s9
    %p158 = scmp.lt.s32.totalorder %s9, 3
    %p159 = pnand %p157, %p158
    %p160 = pneg %p159
    // Predicated region
    $region29: #{a_call__.1} parent=5 // pred_check
      _
    $region30: #{a_call__.1} parent=5 // pred_check_branch
      %162 = sbr.rel (%p159) target = $region32
    $region31: #{a_call__.1} parent=5 // pred_region
      %s163 = ssub.s32 %s9, 1
      %s164 = smul.u32 2, %s19
      %p165 = scmp.lt.s32.totalorder %s18, 1
      %s166 = scalar_select %p165, %s18, 1
      %p167 = scmp.lt.s32.totalorder %s164, 1
      %s168 = scalar_select %p167, %s164, 1
      %s169 = smul.addr %s166, 2
      %s170 = sadd.s32 %s168, %s169
      %s171 = smul.addr %s170, 4
      %s172 = scalar_lea.vmem %s0, %s171
      %p173 = pneg %p49
      %p174 = pneg %p46
      %p175 = pneg %p70
      %p176 = pneg %p67
      %p177 = pneg %p91
      %p178 = pneg %p88
      %p179 = pneg %p119
      %p180 = pneg %p116
      %s181 = smul.u32 2, %s19
      %p182 = scmp.lt.s32.totalorder %s18, 1
      %s183 = scalar_select %p182, %s18, 1
      %p184 = scmp.lt.s32.totalorder %s181, 1
      %s185 = scalar_select %p184, %s181, 1
      %s186 = smul.addr %s183, 16
      %s187 = sadd.s32 %s185, %s186
      %s188 = smul.addr %s187, 8
      %s189 = scalar_lea.vmem %s3, %s188
      %s190 = smul.u32 2, %s19
      %p191 = scmp.lt.s32.totalorder %s18, 1
      %s192 = scalar_select %p191, %s18, 1
      %p193 = scmp.lt.s32.totalorder %s190, 1
      %s194 = scalar_select %p193, %s190, 1
      %s195 = smul.addr %s192, 2
      %s196 = sadd.s32 %s194, %s195
      %s197 = smul.addr %s196, 4
      %s198 = scalar_lea.vmem %s0, %s197
      %s199 = smul.u32 2, %s19
      %s200 = smul.u32 2, %s19
      %p201 = scmp.lt.s32.totalorder %s18, 1
      %s202 = scalar_select %p201, %s18, 1
      %p203 = scmp.lt.s32.totalorder %s200, 1
      %s204 = scalar_select %p203, %s200, 1
      %s205 = smul.addr %s202, 16
      %s206 = sadd.s32 %s204, %s205
      %s207 = smul.addr %s206, 8
      %s208 = scalar_lea.vmem %s3, %s207
      %s209 = smul.u32 2, %s19
      %v210 = vld [vmem:[%s1] sm:$0xff]
      %v211 = vld [vmem:[%s1 + $0x8] sm:$0xff]
      %v212 = vld [vmem:[%s1 + $0x10] sm:$0xff]
      %v213 = vld [vmem:[%s1 + $0x18] sm:$0xff]
      %v214 = vld [vmem:[%s1 + $0x20] sm:$0xff]
      %v215 = vld [vmem:[%s1 + $0x28] sm:$0xff]
      %v216 = vld [vmem:[%s1 + $0x30] sm:$0xff]
      %v217 = vld [vmem:[%s1 + $0x38] sm:$0xff]
      %v218 = vld [vmem:[%s198] sm:$0xff]
      %v219 = vld [vmem:[%s2] sm:$0xff]
      %v220 = vld [vmem:[%s2 + $0x8] sm:$0xff]
      %v221 = vld [vmem:[%s2 + $0x10] sm:$0xff]
      %v222 = vld [vmem:[%s2 + $0x18] sm:$0xff]
      %v223 = vld [vmem:[%s2 + $0x20] sm:$0xff]
      %v224 = vld [vmem:[%s2 + $0x28] sm:$0xff]
      %v225 = vld [vmem:[%s2 + $0x30] sm:$0xff]
      %v226 = vld [vmem:[%s2 + $0x38] sm:$0xff]
      %228 = vset.pattern.permute.xlu0 0
      %229 = vperm.xlu0 %228, %v219
      %v230 = vpop.permute.xlu0 %229
      %233 = vset.pattern.permute.xlu0 0
      %234 = vperm.xlu0 %233, %v220
      %v235 = vpop.permute.xlu0 %234
      %238 = vset.pattern.permute.xlu0 0
      %239 = vperm.xlu0 %238, %v221
      %v240 = vpop.permute.xlu0 %239
      %243 = vset.pattern.permute.xlu0 0
      %244 = vperm.xlu0 %243, %v222
      %v245 = vpop.permute.xlu0 %244
      %248 = vset.pattern.permute.xlu0 0
      %249 = vperm.xlu0 %248, %v223
      %v250 = vpop.permute.xlu0 %249
      %253 = vset.pattern.permute.xlu0 0
      %254 = vperm.xlu0 %253, %v224
      %v255 = vpop.permute.xlu0 %254
      %258 = vset.pattern.permute.xlu0 0
      %259 = vperm.xlu0 %258, %v225
      %v260 = vpop.permute.xlu0 %259
      %263 = vset.pattern.permute.xlu0 0
      %264 = vperm.xlu0 %263, %v226
      %v265 = vpop.permute.xlu0 %264
      %268 = vst [vmem:[#allocation1] ss:$2 sm:$0xff] %v218
      %v269 = vld.sshfl [vmem:[#allocation1] sm:$0xff pattern:$0x75316420]
      %v270 = vld.sshfl [vmem:[#allocation1 + $0x8] sm:$0xff pattern:$0x75316420]
      %vm271 = vcmask 31744
      %v273 = vsel %vm271, %v210, 0
      %v276 = vsel %vm271, %v211, 0
      %v279 = vsel %vm271, %v212, 0
      %v282 = vsel %vm271, %v213, 0
      %v285 = vsel %vm271, %v214, 0
      %v288 = vsel %vm271, %v215, 0
      %v291 = vsel %vm271, %v216, 0
      %v294 = vsel %vm271, %v217, 0
      %vm296 = vcmask 1043456
      %v297 = vsel %vm296, %v269, 0
      %v299 = vsel %vm296, %v270, 0
      %301 = vmatpush.msra.mxu0 0.0
      %302 = vmatpush.msra.mxu0 0.0
      %303 = vmatpush.msra.mxu0 0.0
      %304 = vmatpush.msra.mxu0 0.0
      %305 = vmatpush.msra.mxu0 0.0
      %306 = vmatpush.msra.mxu0 0.0
      %307 = vmatpush.msra.mxu0 0.0
      %308 = vmatpush.msra.mxu0 0.0
      %309 = vmatpush.msra.mxu0 0.0
      %310 = vmatpush.msra.mxu0 0.0
      %311 = vmatpush.msra.mxu0 0.0
      %312 = vmatpush.msra.mxu0 0.0
      %313 = vmatpush.msra.mxu0 0.0
      %314 = vmatpush.msra.mxu0 0.0
      %315 = vmatpush.msra.mxu0 0.0
      %316 = vmatpush.msra.mxu0 %v297
      %317 = vmatmul.f32.gmra.mxu0 %v273
      %v318 = vpop.f32.mrf.mxu0
      %v319 = vadd.f32 %v230, %v318
      %320 = vmatmul.f32.gmra.mxu0 %v276
      %v321 = vpop.f32.mrf.mxu0
      %v322 = vadd.f32 %v235, %v321
      %323 = vmatmul.f32.gmra.mxu0 %v279
      %v324 = vpop.f32.mrf.mxu0
      %v325 = vadd.f32 %v240, %v324
      %326 = vmatmul.f32.gmra.mxu0 %v282
      %v327 = vpop.f32.mrf.mxu0
      %v328 = vadd.f32 %v245, %v327
      %329 = vmatmul.f32.gmra.mxu0 %v285
      %v330 = vpop.f32.mrf.mxu0
      %v331 = vadd.f32 %v250, %v330
      %332 = vmatmul.f32.gmra.mxu0 %v288
      %v333 = vpop.f32.mrf.mxu0
      %v334 = vadd.f32 %v255, %v333
      %335 = vmatmul.f32.gmra.mxu0 %v291
      %v336 = vpop.f32.mrf.mxu0
      %v337 = vadd.f32 %v260, %v336
      %338 = vmatmul.f32.gmra.mxu0 %v294
      %v339 = vpop.f32.mrf.mxu0
      %v340 = vadd.f32 %v265, %v339
      %341 = vdwg.mxu0
      %342 = vmatpush.msra.mxu0 0.0
      %343 = vmatpush.msra.mxu0 0.0
      %344 = vmatpush.msra.mxu0 0.0
      %345 = vmatpush.msra.mxu0 0.0
      %346 = vmatpush.msra.mxu0 0.0
      %347 = vmatpush.msra.mxu0 0.0
      %348 = vmatpush.msra.mxu0 0.0
      %349 = vmatpush.msra.mxu0 0.0
      %350 = vmatpush.msra.mxu0 0.0
      %351 = vmatpush.msra.mxu0 0.0
      %352 = vmatpush.msra.mxu0 0.0
      %353 = vmatpush.msra.mxu0 0.0
      %354 = vmatpush.msra.mxu0 0.0
      %355 = vmatpush.msra.mxu0 0.0
      %356 = vmatpush.msra.mxu0 0.0
      %357 = vmatpush.msra.mxu0 %v299
      %358 = vmatmul.f32.gmra.mxu0 %v273
      %v359 = vpop.f32.mrf.mxu0
      %v360 = vadd.f32 %v230, %v359
      %361 = vmatmul.f32.gmra.mxu0 %v276
      %v362 = vpop.f32.mrf.mxu0
      %v363 = vadd.f32 %v235, %v362
      %364 = vmatmul.f32.gmra.mxu0 %v279
      %v365 = vpop.f32.mrf.mxu0
      %v366 = vadd.f32 %v240, %v365
      %367 = vmatmul.f32.gmra.mxu0 %v282
      %v368 = vpop.f32.mrf.mxu0
      %v369 = vadd.f32 %v245, %v368
      %370 = vmatmul.f32.gmra.mxu0 %v285
      %v371 = vpop.f32.mrf.mxu0
      %v372 = vadd.f32 %v250, %v371
      %373 = vmatmul.f32.gmra.mxu0 %v288
      %v374 = vpop.f32.mrf.mxu0
      %v375 = vadd.f32 %v255, %v374
      %376 = vmatmul.f32.gmra.mxu0 %v291
      %v377 = vpop.f32.mrf.mxu0
      %v378 = vadd.f32 %v260, %v377
      %379 = vmatmul.f32.gmra.mxu0 %v294
      %v380 = vpop.f32.mrf.mxu0
      %v381 = vadd.f32 %v265, %v380
      %382 = vdwg.mxu0
      %v383 = vmax.f32 %v319, 0.0
      %v384 = vmax.f32 %v360, 0.0
      %v385 = vmax.f32 %v322, 0.0
      %v386 = vmax.f32 %v363, 0.0
      %v387 = vmax.f32 %v325, 0.0
      %v388 = vmax.f32 %v366, 0.0
      %v389 = vmax.f32 %v328, 0.0
      %v390 = vmax.f32 %v369, 0.0
      %v391 = vmax.f32 %v331, 0.0
      %v392 = vmax.f32 %v372, 0.0
      %v393 = vmax.f32 %v334, 0.0
      %v394 = vmax.f32 %v375, 0.0
      %v395 = vmax.f32 %v337, 0.0
      %v396 = vmax.f32 %v378, 0.0
      %v397 = vmax.f32 %v340, 0.0
      %v398 = vmax.f32 %v381, 0.0
      %399 = vst [vmem:[%s208] sm:$0xff] %v383
      %400 = vst [vmem:[%s208 + $0x8] sm:$0xff] %v384
      %401 = vst [vmem:[%s208 + $0x10] sm:$0xff] %v385
      %402 = vst [vmem:[%s208 + $0x18] sm:$0xff] %v386
      %403 = vst [vmem:[%s208 + $0x20] sm:$0xff] %v387
      %404 = vst [vmem:[%s208 + $0x28] sm:$0xff] %v388
      %405 = vst [vmem:[%s208 + $0x30] sm:$0xff] %v389
      %406 = vst [vmem:[%s208 + $0x38] sm:$0xff] %v390
      %407 = vst [vmem:[%s208 + $0x40] sm:$0xff] %v391
      %408 = vst [vmem:[%s208 + $0x48] sm:$0xff] %v392
      %409 = vst [vmem:[%s208 + $0x50] sm:$0xff] %v393
      %410 = vst [vmem:[%s208 + $0x58] sm:$0xff] %v394
      %411 = vst [vmem:[%s208 + $0x60] sm:$0xff] %v395
      %412 = vst [vmem:[%s208 + $0x68] sm:$0xff] %v396
      %413 = vst [vmem:[%s208 + $0x70] sm:$0xff] %v397
      %414 = vst [vmem:[%s208 + $0x78] sm:$0xff] %v398
      %s415 = smul.u32 2, %s19
      %p416 = scmp.lt.s32.totalorder %s18, 1
      %s417 = scalar_select %p416, %s18, 1
      %p418 = scmp.lt.s32.totalorder %s415, 1
      %s419 = scalar_select %p418, %s415, 1
      %s420 = smul.addr %s417, 16
      %s421 = sadd.s32 %s419, %s420
      %s422 = smul.addr %s421, 8
      %s423 = scalar_lea.vmem %s3, %s422
      // Predicated region
      $region33: #{a_call__.1} parent=31 // pred_check
        %p424 = pneg %p116
      $region34: #{a_call__.1} parent=31 // pred_check_branch
        %426 = sbr.rel (%p424) target = $region36
      $region35: #{a_call__.1} parent=31 // pred_region
        %s427 = smul.u32 2, %s19
      $region36: #{a_call__.1} parent=31 // pred_fallthru
        _
    $region32: #{a_call__.1} parent=5 // pred_fallthru
      _
    %p428 = scmp.le.s32.totalorder 2, %s9
    // Predicated region
    $region37: #{a_call__.1} parent=5 // pred_check
      %p429 = pneg %p428
    $region38: #{a_call__.1} parent=5 // pred_check_branch
      %431 = sbr.rel (%p429) target = $region40
    $region39: #{a_call__.1} parent=5 // pred_region
      %s432 = ssub.s32 %s9, 2
      // Predicated region
      $region41: #{a_call__.1} parent=39 // pred_check
        %p433 = pneg %p122
      $region42: #{a_call__.1} parent=39 // pred_check_branch
        %435 = sbr.rel (%p433) target = $region44
      $region43: #{a_call__.1} parent=39 // pred_region
        %s436 = smul.u32 2, %s21
        %p437 = scmp.lt.s32.totalorder %s20, 1
        %s438 = scalar_select %p437, %s20, 1
        %p439 = scmp.lt.s32.totalorder %s436, 1
        %s440 = scalar_select %p439, %s436, 1
        %s441 = smul.addr %s438, 16
        %s442 = sadd.s32 %s440, %s441
        %s443 = smul.addr %s442, 8
        %s444 = scalar_lea.vmem %s3, %s443
      $region44: #{a_call__.1} parent=39 // pred_fallthru
        _
    $region40: #{a_call__.1} parent=5 // pred_fallthru
      _
  $region6: #{a_call__.1} parent=0 // loop_footer
    %s13 = sadd.s32 1, %s9
  $region7: #{a_call__.1} parent=0 // loop_footer_branch
    %8 = sbr.rel target = $region3
  $region8: #{a_call__.1} parent=0 // loop_exit
    _

</llo_original>
